<compile_context>
chip_gen: v5e
topology: v5e:2x2
jax: 0.10.0
libtpu: 0.0.40
codegen_flags: <defaults>
</compile_context>

<pallas_src>
import jax
import jax.numpy as jnp
from jax.experimental import pallas as pl
from jax.experimental.pallas import tpu as pltpu

HIDDEN = 64


def _round_up(x, m):
    return (x + m - 1) // m * m


def _ppo_kernel(states_ref, noise_ref,
                w1f_ref, b1f_ref, w2_ref, b2_ref,
                wc1a_ref, wc2_ref, bc2_ref,
                out_ref):
    """One batch tile (batch on lanes) of the PPO forward pass.

    states_ref : (S, TB)     bf16   states^T
    noise_ref  : (A, TB)     f32    noise^T
    w1f_ref    : (128, S)    bf16   [actor W1 ; critic W1 (state half)]^T
    b1f_ref    : (128, 1)    f32    [actor b1 ; critic b1]^T
    w2_ref     : (2A, 64)    bf16   actor layer-2 weight^T
    b2_ref     : (2A, 1)     f32
    wc1a_ref   : (64, A)     bf16   critic W1 (action half)^T
    wc2_ref    : (1, 64)     bf16   critic head weight (row)
    bc2_ref    : (1, 1)      f32    critic head bias (SMEM scalar)
    out_ref    : (A+2, TB)   f32    rows [0:A]=action^T, [A]=log_prob, [A+1]=value
    """
    A = noise_ref.shape[0]
    H = HIDDEN

    x = states_ref[...]                                   # (S, TB)  bf16
    noise = noise_ref[...]                                # (A, TB)  f32

    # Fused layer 1: one 128-row matmul covers actor layer-1 and the state
    # half of critic layer-1 (no concat of [states, action]).
    h_all = jnp.dot(w1f_ref[...], x,
                    preferred_element_type=jnp.float32) + b1f_ref[...]    # (128, TB)
    h_actor = jnp.maximum(h_all[:H], 0.0)                 # actor hidden       (64, TB)
    hc_pre = h_all[H:]                                    # Wc1_s @ x + bc1    (64, TB)

    # Actor layer 2 -> mean / log_std (lane-dense, batch on lanes).
    a_out = jnp.dot(w2_ref[...], h_actor.astype(jnp.bfloat16),
                    preferred_element_type=jnp.float32) + b2_ref[...]     # (2A, TB)
    action_mean = a_out[:A]
    action_log_std = jnp.clip(a_out[A:], -5.0, 0.5)
    action_std = jnp.exp(action_log_std)
    action = action_mean + action_std * noise             # reparameterized sample

    # Normal(mean, std).log_prob(action).sum(-1): (action - mean)/std == noise
    # exactly, so the divide is elided.  The sum over A is an A-row sublane
    # reduce (cheap), not a 128-lane XLU reduce.
    log_prob = -0.5 * noise * noise - action_log_std - 0.5 * jnp.log(2.0 * jnp.pi)
    logp = jnp.sum(log_prob, axis=0, keepdims=True)       # (1, TB)

    # Critic: ReLU(Wc1_s@x + Wc1_a@action + bc1), then the (64 -> 1) head as a
    # lane-dense MXU matmul (M=1) instead of a VPU multiply + lane reduce.
    hc = jnp.maximum(
        hc_pre + jnp.dot(wc1a_ref[...], action.astype(jnp.bfloat16),
                         preferred_element_type=jnp.float32),
        0.0)                                              # (64, TB)
    value = jnp.dot(wc2_ref[...], hc.astype(jnp.bfloat16),
                    preferred_element_type=jnp.float32) + bc2_ref[0, 0]   # (1, TB)

    # Lane-dense output slab; direct row-slice stores (no concatenate).
    out_ref[:A, :] = action
    out_ref[A:A + 1, :] = logp
    out_ref[A + 1:, :] = value


def ppo_forward(states, noise, params, *, block_b=8192):
    """states: (B, S) f32, noise: (B, A) f32 standard normal.

    Returns ((action, action_log_prob), value), matching the (intended) PyTorch forward.
    """
    B, S = states.shape
    A = noise.shape[-1]
    H = HIDDEN
    w1, b1, w2, b2, wc1, bc1, wc2, bc2 = params

    # Host-side packing for the feature-major layout (y^T = W^T @ x^T):
    w1f_t = jnp.concatenate([w1, wc1[:S]], axis=1).T.astype(jnp.bfloat16)   # (128, S)
    b1f_c = jnp.concatenate([b1, bc1], axis=1).T                            # (128, 1)
    w2_t = w2.T.astype(jnp.bfloat16)                                        # (2A, 64)
    b2_c = b2.T                                                             # (2A, 1)
    wc1a_t = wc1[S:].T.astype(jnp.bfloat16)                                 # (64, A)
    wc2_r = wc2.T.astype(jnp.bfloat16)                                      # (1, 64)
    bc2_s = bc2.reshape(1, 1)                                               # (1, 1) -> SMEM

    # Batch goes on the lane axis: TB a multiple of 128; aim for >= 2 grid
    # steps (v7x megacore) while capping TB (v7x VMEM / scoped-limit safe).
    TB = max(128, min(block_b, _round_up((B + 1) // 2, 128)))
    Bp = _round_up(B, TB)
    n_blocks = Bp // TB

    states_t = states.T.astype(jnp.bfloat16)                                # (S, B)
    noise_t = noise.T                                                       # (A, B)
    if Bp != B:
        states_t = jnp.pad(states_t, ((0, 0), (0, Bp - B)))
        noise_t = jnp.pad(noise_t, ((0, 0), (0, Bp - B)))

    OUT_R = A + 2

    def batched(rows):
        return pl.BlockSpec((rows, TB), lambda i: (0, i))

    def const(shape):
        return pl.BlockSpec(shape, lambda i: (0, 0))      # constant -> no re-DMA per step

    cost = pl.CostEstimate(
        flops=2 * Bp * (S * 2 * H + H * 2 * A + A * H + H),
        transcendentals=Bp * A,
        bytes_accessed=(Bp * (S * 2 + A * 4 + OUT_R * 4)
                        + w1f_t.size * 2 + b1f_c.size * 4 + w2_t.size * 2 + b2_c.size * 4
                        + wc1a_t.size * 2 + wc2_r.size * 2 + 4),
    )

    out = pl.pallas_call(
        _ppo_kernel,
        out_shape=jax.ShapeDtypeStruct((OUT_R, Bp), jnp.float32),
        grid=(n_blocks,),
        in_specs=[
            batched(S),                                      # states^T
            batched(A),                                      # noise^T
            const((2 * H, S)),                               # fused layer-1 weight^T
            const((2 * H, 1)),                               # fused layer-1 bias
            const((2 * A, H)),                               # actor layer-2 weight^T
            const((2 * A, 1)),                               # actor layer-2 bias
            const((H, A)),                                   # critic layer-1 action half^T
            const((1, H)),                                   # critic head weight (row)
            pl.BlockSpec(memory_space=pltpu.MemorySpace.SMEM),  # critic head bias scalar
        ],
        out_specs=batched(OUT_R),
        compiler_params=pltpu.CompilerParams(
            dimension_semantics=("parallel",),
            vmem_limit_bytes=32 * 1024 * 1024,
        ),
        cost_estimate=cost,
    )(states_t, noise_t, w1f_t, b1f_c, w2_t, b2_c, wc1a_t, wc2_r, bc2_s)

    action = out[:A, :B].T                                   # (B, A)
    action_log_prob = out[A, :B]                             # (B,)
    value = out[A + 1:A + 2, :B].T                           # (B, 1)
    return (action, action_log_prob), value


def _ppo_reference(states, noise, params):
    """Pure-JAX f32 reference (same math as the PyTorch module)."""
    w1, b1, w2, b2, wc1, bc1, wc2, bc2 = params
    A = noise.shape[-1]
    h = jnp.maximum(states @ w1 + b1, 0.0)
    a_out = h @ w2 + b2
    mean = a_out[:, :A]
    log_std = jnp.clip(a_out[:, A:], -5.0, 0.5)
    std = jnp.exp(log_std)
    action = mean + std * noise
    z = (action - mean) / std
    logp = jnp.sum(-0.5 * z * z - log_std - 0.5 * jnp.log(2.0 * jnp.pi), axis=-1)
    sa = jnp.concatenate([states, action], axis=-1)
    hc = jnp.maximum(sa @ wc1 + bc1, 0.0)
    value = hc @ wc2 + bc2
    return (action, logp), value


def init_params(key, state_dim, action_dim):
    """Deterministic parameter init (shapes match the PyTorch module, stored (in, out))."""
    ks = jax.random.split(key, 8)

    def lin(kw, kb, fan_in, fan_out):
        bound = 1.0 / jnp.sqrt(jnp.float32(fan_in))
        w = jax.random.uniform(kw, (fan_in, fan_out), jnp.float32, -bound, bound)
        b = jax.random.uniform(kb, (1, fan_out), jnp.float32, -bound, bound)
        return w, b

    w1, b1 = lin(ks[0], ks[1], state_dim, HIDDEN)
    w2, b2 = lin(ks[2], ks[3], HIDDEN, action_dim * 2)
    wc1, bc1 = lin(ks[4], ks[5], state_dim + action_dim, HIDDEN)
    wc2, bc2 = lin(ks[6], ks[7], HIDDEN, 1)
    return (w1, b1, w2, b2, wc1, bc1, wc2, bc2)


if __name__ == "__main__":
    state_dim, action_dim, batch = 16, 4, 2

    key = jax.random.PRNGKey(0)
    k_param, k_state, k_noise = jax.random.split(key, 3)

    params = init_params(k_param, state_dim, action_dim)
    states = jax.random.normal(k_state, (batch, state_dim), jnp.float32)
    noise = jax.random.normal(k_noise, (batch, action_dim), jnp.float32)

    (action, action_log_prob), value = ppo_forward(states, noise, params)
    jax.block_until_ready((action, action_log_prob, value))

    assert action.shape == (batch, action_dim)
    assert action_log_prob.shape == (batch,)
    assert value.shape == (batch, 1)

    # Correctness vs. pure-JAX f32 reference (tolerance covers bf16 matmul operands).
    (a_ref, lp_ref), v_ref = _ppo_reference(states, noise, params)
    assert bool(jnp.allclose(action, a_ref, atol=5e-2, rtol=5e-2))
    assert bool(jnp.allclose(action_log_prob, lp_ref, atol=5e-2, rtol=5e-2))
    assert bool(jnp.allclose(value, v_ref, atol=5e-2, rtol=5e-2))

    print("KERNEL_OK")
</pallas_src>

<mosaic_0001>
module attributes {stable_mosaic.version = 11 : i64} {
  func.func @_ppo_kernel(%arg0: i32, %arg1: memref<16x128xbf16, #tpu.memory_space<vmem>>, %arg2: memref<4x128xf32, #tpu.memory_space<vmem>>, %arg3: memref<128x16xbf16, #tpu.memory_space<vmem>>, %arg4: memref<128x1xf32, #tpu.memory_space<vmem>>, %arg5: memref<8x64xbf16, #tpu.memory_space<vmem>>, %arg6: memref<8x1xf32, #tpu.memory_space<vmem>>, %arg7: memref<64x4xbf16, #tpu.memory_space<vmem>>, %arg8: memref<1x64xbf16, #tpu.memory_space<vmem>>, %arg9: memref<1x1xf32, #tpu.memory_space<smem>>, %arg10: memref<6x128xf32, #tpu.memory_space<vmem>>) attributes {dimension_semantics = [#tpu.dimension_semantics<parallel>], iteration_bounds = array<i64: 1>, scalar_prefetch = 0 : i64, scratch_operands = 0 : i64, tpu.core_type = #tpu.core_type<tc>, window_params = [{transform_indices = @transform_0, window_bounds = array<i64: 16, 128>}, {transform_indices = @transform_1, window_bounds = array<i64: 4, 128>}, {pipeline_mode = #tpu.pipeline_mode<synchronous>, transform_indices = @transform_2, window_bounds = array<i64: 128, 16>}, {pipeline_mode = #tpu.pipeline_mode<synchronous>, transform_indices = @transform_3, window_bounds = array<i64: 128, 1>}, {pipeline_mode = #tpu.pipeline_mode<synchronous>, transform_indices = @transform_4, window_bounds = array<i64: 8, 64>}, {pipeline_mode = #tpu.pipeline_mode<synchronous>, transform_indices = @transform_5, window_bounds = array<i64: 8, 1>}, {pipeline_mode = #tpu.pipeline_mode<synchronous>, transform_indices = @transform_6, window_bounds = array<i64: 64, 4>}, {pipeline_mode = #tpu.pipeline_mode<synchronous>, transform_indices = @transform_7, window_bounds = array<i64: 1, 64>}, {transform_indices = @transform_8, window_bounds = array<i64: 1, 1>}, {transform_indices = @transform_9, window_bounds = array<i64: 6, 128>}]} {
    %c0 = arith.constant 0 : index
    %c0_0 = arith.constant 0 : index
    %0 = vector.load %arg1[%c0, %c0_0] : memref<16x128xbf16, #tpu.memory_space<vmem>>, vector<16x128xbf16>
    %c0_1 = arith.constant 0 : index
    %c0_2 = arith.constant 0 : index
    %1 = vector.load %arg2[%c0_1, %c0_2] : memref<4x128xf32, #tpu.memory_space<vmem>>, vector<4x128xf32>
    %c0_3 = arith.constant 0 : index
    %c0_4 = arith.constant 0 : index
    %2 = vector.load %arg3[%c0_3, %c0_4] : memref<128x16xbf16, #tpu.memory_space<vmem>>, vector<128x16xbf16>
    %cst = arith.constant dense<0.000000e+00> : vector<128x128xf32>
    %3 = tpu.matmul %2, %0, %cst {dimension_numbers = #tpu.dot_dimension_numbers<[1], [0], [0], [1], [0, 0, 1, 1], [], []>} : vector<128x16xbf16>, vector<16x128xbf16>, vector<128x128xf32> -> vector<128x128xf32>
    %c0_5 = arith.constant 0 : index
    %c0_6 = arith.constant 0 : index
    %4 = vector.load %arg4[%c0_5, %c0_6] : memref<128x1xf32, #tpu.memory_space<vmem>>, vector<128x1xf32>
    %5 = vector.broadcast %4 : vector<128x1xf32> to vector<128x128xf32>
    %6 = arith.addf %3, %5 : vector<128x128xf32>
    %7 = vector.extract_strided_slice %6 {offsets = [0, 0], sizes = [64, 128], strides = [1, 1]} : vector<128x128xf32> to vector<64x128xf32>
    %cst_7 = arith.constant 0.000000e+00 : f32
    %8 = vector.broadcast %cst_7 : f32 to vector<64x128xf32>
    %9 = arith.maximumf %7, %8 : vector<64x128xf32>
    %10 = vector.extract_strided_slice %6 {offsets = [64, 0], sizes = [64, 128], strides = [1, 1]} : vector<128x128xf32> to vector<64x128xf32>
    %c0_8 = arith.constant 0 : index
    %c0_9 = arith.constant 0 : index
    %11 = vector.load %arg5[%c0_8, %c0_9] : memref<8x64xbf16, #tpu.memory_space<vmem>>, vector<8x64xbf16>
    %12 = arith.truncf %9 : vector<64x128xf32> to vector<64x128xbf16>
    %cst_10 = arith.constant dense<0.000000e+00> : vector<8x128xf32>
    %13 = tpu.matmul %11, %12, %cst_10 {dimension_numbers = #tpu.dot_dimension_numbers<[1], [0], [0], [1], [0, 0, 1, 1], [], []>} : vector<8x64xbf16>, vector<64x128xbf16>, vector<8x128xf32> -> vector<8x128xf32>
    %c0_11 = arith.constant 0 : index
    %c0_12 = arith.constant 0 : index
    %14 = vector.load %arg6[%c0_11, %c0_12] : memref<8x1xf32, #tpu.memory_space<vmem>>, vector<8x1xf32>
    %15 = vector.broadcast %14 : vector<8x1xf32> to vector<8x128xf32>
    %16 = arith.addf %13, %15 : vector<8x128xf32>
    %17 = vector.extract_strided_slice %16 {offsets = [0, 0], sizes = [4, 128], strides = [1, 1]} : vector<8x128xf32> to vector<4x128xf32>
    %18 = vector.extract_strided_slice %16 {offsets = [4, 0], sizes = [4, 128], strides = [1, 1]} : vector<8x128xf32> to vector<4x128xf32>
    %cst_13 = arith.constant -5.000000e+00 : f32
    %cst_14 = arith.constant 5.000000e-01 : f32
    %19 = vector.broadcast %cst_13 : f32 to vector<4x128xf32>
    %20 = arith.maximumf %19, %18 : vector<4x128xf32>
    %21 = vector.broadcast %cst_14 : f32 to vector<4x128xf32>
    %22 = arith.minimumf %21, %20 : vector<4x128xf32>
    %23 = math.exp %22 : vector<4x128xf32>
    %24 = arith.mulf %23, %1 : vector<4x128xf32>
    %25 = arith.addf %17, %24 : vector<4x128xf32>
    %cst_15 = arith.constant -5.000000e-01 : f32
    %26 = vector.broadcast %cst_15 : f32 to vector<4x128xf32>
    %27 = arith.mulf %26, %1 : vector<4x128xf32>
    %28 = arith.mulf %27, %1 : vector<4x128xf32>
    %29 = arith.subf %28, %22 : vector<4x128xf32>
    %cst_16 = arith.constant 6.28318548 : f32
    %30 = math.log %cst_16 : f32
    %cst_17 = arith.constant 5.000000e-01 : f32
    %31 = arith.mulf %cst_17, %30 : f32
    %32 = vector.broadcast %31 : f32 to vector<4x128xf32>
    %33 = arith.subf %29, %32 : vector<4x128xf32>
    %cst_18 = arith.constant dense<0.000000e+00> : vector<128xf32>
    %34 = vector.multi_reduction <add>, %33, %cst_18 [0] : vector<4x128xf32> to vector<128xf32>
    %35 = vector.shape_cast %34 : vector<128xf32> to vector<1x128xf32>
    %c0_19 = arith.constant 0 : index
    %c0_20 = arith.constant 0 : index
    %36 = vector.load %arg7[%c0_19, %c0_20] : memref<64x4xbf16, #tpu.memory_space<vmem>>, vector<64x4xbf16>
    %37 = arith.truncf %25 : vector<4x128xf32> to vector<4x128xbf16>
    %cst_21 = arith.constant dense<0.000000e+00> : vector<64x128xf32>
    %38 = tpu.matmul %36, %37, %cst_21 {dimension_numbers = #tpu.dot_dimension_numbers<[1], [0], [0], [1], [0, 0, 1, 1], [], []>} : vector<64x4xbf16>, vector<4x128xbf16>, vector<64x128xf32> -> vector<64x128xf32>
    %39 = arith.addf %10, %38 : vector<64x128xf32>
    %cst_22 = arith.constant 0.000000e+00 : f32
    %40 = vector.broadcast %cst_22 : f32 to vector<64x128xf32>
    %41 = arith.maximumf %39, %40 : vector<64x128xf32>
    %c0_23 = arith.constant 0 : index
    %c0_24 = arith.constant 0 : index
    %42 = vector.load %arg8[%c0_23, %c0_24] : memref<1x64xbf16, #tpu.memory_space<vmem>>, vector<1x64xbf16>
    %43 = arith.truncf %41 : vector<64x128xf32> to vector<64x128xbf16>
    %cst_25 = arith.constant dense<0.000000e+00> : vector<1x128xf32>
    %44 = tpu.matmul %42, %43, %cst_25 {dimension_numbers = #tpu.dot_dimension_numbers<[1], [0], [0], [1], [0, 0, 1, 1], [], []>} : vector<1x64xbf16>, vector<64x128xbf16>, vector<1x128xf32> -> vector<1x128xf32>
    %c0_26 = arith.constant 0 : index
    %c0_27 = arith.constant 0 : index
    %45 = memref.load %arg9[%c0_26, %c0_27] : memref<1x1xf32, #tpu.memory_space<smem>>
    %46 = vector.broadcast %45 : f32 to vector<1x128xf32>
    %47 = arith.addf %44, %46 : vector<1x128xf32>
    %c0_28 = arith.constant 0 : index
    %c0_29 = arith.constant 0 : index
    %48 = vector.load %arg10[%c0_28, %c0_29] : memref<6x128xf32, #tpu.memory_space<vmem>>, vector<4x128xf32>
    tpu.vector_store %arg10[%c0_28, %c0_29], %25 {strides = array<i32>} : memref<6x128xf32, #tpu.memory_space<vmem>>, vector<4x128xf32>,
    %c4 = arith.constant 4 : index
    %c0_30 = arith.constant 0 : index
    %49 = vector.load %arg10[%c4, %c0_30] : memref<6x128xf32, #tpu.memory_space<vmem>>, vector<1x128xf32>
    tpu.vector_store %arg10[%c4, %c0_30], %35 {strides = array<i32>} : memref<6x128xf32, #tpu.memory_space<vmem>>, vector<1x128xf32>,
    %c5 = arith.constant 5 : index
    %c0_31 = arith.constant 0 : index
    %50 = vector.load %arg10[%c5, %c0_31] : memref<6x128xf32, #tpu.memory_space<vmem>>, vector<1x128xf32>
    tpu.vector_store %arg10[%c5, %c0_31], %47 {strides = array<i32>} : memref<6x128xf32, #tpu.memory_space<vmem>>, vector<1x128xf32>,
    return
  }
  func.func @transform_0(%arg0: i32) -> (i32, i32) {
    %c0_i32 = arith.constant 0 : i32
    %c0_i32_0 = arith.constant 0 : i32
    return %c0_i32, %arg0 : i32, i32
  }
  func.func @transform_1(%arg0: i32) -> (i32, i32) {
    %c0_i32 = arith.constant 0 : i32
    %c0_i32_0 = arith.constant 0 : i32
    return %c0_i32, %arg0 : i32, i32
  }
  func.func @transform_2(%arg0: i32) -> (i32, i32) {
    %c0_i32 = arith.constant 0 : i32
    %c0_i32_0 = arith.constant 0 : i32
    %c0_i32_1 = arith.constant 0 : i32
    return %c0_i32, %c0_i32_0 : i32, i32
  }
  func.func @transform_3(%arg0: i32) -> (i32, i32) {
    %c0_i32 = arith.constant 0 : i32
    %c0_i32_0 = arith.constant 0 : i32
    %c0_i32_1 = arith.constant 0 : i32
    return %c0_i32, %c0_i32_0 : i32, i32
  }
  func.func @transform_4(%arg0: i32) -> (i32, i32) {
    %c0_i32 = arith.constant 0 : i32
    %c0_i32_0 = arith.constant 0 : i32
    %c0_i32_1 = arith.constant 0 : i32
    return %c0_i32, %c0_i32_0 : i32, i32
  }
  func.func @transform_5(%arg0: i32) -> (i32, i32) {
    %c0_i32 = arith.constant 0 : i32
    %c0_i32_0 = arith.constant 0 : i32
    %c0_i32_1 = arith.constant 0 : i32
    return %c0_i32, %c0_i32_0 : i32, i32
  }
  func.func @transform_6(%arg0: i32) -> (i32, i32) {
    %c0_i32 = arith.constant 0 : i32
    %c0_i32_0 = arith.constant 0 : i32
    %c0_i32_1 = arith.constant 0 : i32
    return %c0_i32, %c0_i32_0 : i32, i32
  }
  func.func @transform_7(%arg0: i32) -> (i32, i32) {
    %c0_i32 = arith.constant 0 : i32
    %c0_i32_0 = arith.constant 0 : i32
    %c0_i32_1 = arith.constant 0 : i32
    return %c0_i32, %c0_i32_0 : i32, i32
  }
  func.func @transform_8(%arg0: i32) -> (i32, i32) {
    %c0_i32 = arith.constant 0 : i32
    %c0_i32_0 = arith.constant 0 : i32
    %c0_i32_1 = arith.constant 0 : i32
    return %c0_i32, %c0_i32_0 : i32, i32
  }
  func.func @transform_9(%arg0: i32) -> (i32, i32) {
    %c0_i32 = arith.constant 0 : i32
    %c0_i32_0 = arith.constant 0 : i32
    return %c0_i32, %arg0 : i32, i32
  }
}

</mosaic_0001>

<llo_original>
// kernel: tpu_custom_call.1
$region0: #{tpu_custom_call.1}
  #allocation0 [shape = 'u32[]', space=smem, size = 0x4, offset = 0x4, fixed_abs, tag = 'smem constant byte address 0x4 - core index']
  #allocation1 [shape = 'u32[72,128]{1,0:T(1,128)}', space=vmem, size = 0x9000, scoped, tag = 'internal scratch']
  #allocation2 [shape = 'f32[1,1]{1,0:T(1,128)S(6)}', space=smem, size = 0x200, scoped, tag = 'scoped memory for tpu_custom_call.1']
  %s0 = inlined_call_operand.vmem [shape: bf16[16,128], index: 0, kind: input, shape index: {}]
  %s1 = inlined_call_operand.vmem [shape: f32[4,128], index: 1, kind: input, shape index: {}]
  %s2 = inlined_call_operand.vmem [shape: bf16[128,16], index: 2, kind: input, shape index: {}]
  %s3 = inlined_call_operand.vmem [shape: f32[128,1], index: 3, kind: input, shape index: {}]
  %s4 = inlined_call_operand.vmem [shape: bf16[8,64], index: 4, kind: input, shape index: {}]
  %s5 = inlined_call_operand.vmem [shape: f32[8,1], index: 5, kind: input, shape index: {}]
  %s6 = inlined_call_operand.vmem [shape: bf16[64,4], index: 6, kind: input, shape index: {}]
  %s7 = inlined_call_operand.vmem [shape: bf16[1,64], index: 7, kind: input, shape index: {}]
  %s8 = inlined_call_operand.<no memory space> [shape: f32[1,1], index: 8, kind: input, shape index: {}]
  %s9 = inlined_call_operand.hbm [shape: f32[6,128], index: 9, kind: output, shape index: {}]
  %s10 = sld [smem:[#allocation0]]
  $region46: #{tpu_custom_call.1} parent=0
    _
  %s12 = ssub.s32 1, %s10
  %s13 = scalar_select 0, %s12, %s10
  %14 = sst [smem:[#allocation2]] %s8
  $region1: #{tpu_custom_call.1} parent=0
    #allocation3 [shape = 'u8[4096]{0}', space=vmem, size = 0x1000, scoped, tag = 'output window, operand 0, single buffered']
    #allocation4 [shape = 's32[1]{0}', space=sflag, size = 0x4, scoped, tag = 'scoped memory for tpu_custom_call.1']
    %15 = vsyncpa [#allocation4], 0
    // Predicated region
    $region2: #{tpu_custom_call.1} parent=1 // pred_check
      _
    $region3: #{tpu_custom_call.1} parent=1 // pred_check_branch
      %17 = sbr.rel (0) target = $region5
    $region4: #{tpu_custom_call.1} parent=1 // pred_region
      _
    $region5: #{tpu_custom_call.1} parent=1 // pred_fallthru
      _
    // Predicated region
    $region6: #{tpu_custom_call.1} parent=1 // pred_check
      _
    $region7: #{tpu_custom_call.1} parent=1 // pred_check_branch
      %19 = sbr.rel (0) target = $region9
    $region8: #{tpu_custom_call.1} parent=1 // pred_region
      _
    $region9: #{tpu_custom_call.1} parent=1 // pred_fallthru
      _
    // Predicated region
    $region10: #{tpu_custom_call.1} parent=1 // pred_check
      _
    $region11: #{tpu_custom_call.1} parent=1 // pred_check_branch
      %21 = sbr.rel (0) target = $region13
    $region12: #{tpu_custom_call.1} parent=1 // pred_region
      _
    $region13: #{tpu_custom_call.1} parent=1 // pred_fallthru
      _
    // Predicated region
    $region14: #{tpu_custom_call.1} parent=1 // pred_check
      _
    $region15: #{tpu_custom_call.1} parent=1 // pred_check_branch
      %23 = sbr.rel (0) target = $region17
    $region16: #{tpu_custom_call.1} parent=1 // pred_region
      _
    $region17: #{tpu_custom_call.1} parent=1 // pred_fallthru
      _
    // Predicated region
    $region18: #{tpu_custom_call.1} parent=1 // pred_check
      _
    $region19: #{tpu_custom_call.1} parent=1 // pred_check_branch
      %25 = sbr.rel (0) target = $region21
    $region20: #{tpu_custom_call.1} parent=1 // pred_region
      _
    $region21: #{tpu_custom_call.1} parent=1 // pred_fallthru
      _
    // Predicated region
    $region22: #{tpu_custom_call.1} parent=1 // pred_check
      _
    $region23: #{tpu_custom_call.1} parent=1 // pred_check_branch
      %27 = sbr.rel (0) target = $region25
    $region24: #{tpu_custom_call.1} parent=1 // pred_region
      _
    $region25: #{tpu_custom_call.1} parent=1 // pred_fallthru
      _
    // Predicated region
    $region26: #{tpu_custom_call.1} parent=1 // pred_check
      _
    $region27: #{tpu_custom_call.1} parent=1 // pred_check_branch
      %29 = sbr.rel (0) target = $region29
    $region28: #{tpu_custom_call.1} parent=1 // pred_region
      _
    $region29: #{tpu_custom_call.1} parent=1 // pred_fallthru
      _
    // Predicated region
    $region30: #{tpu_custom_call.1} parent=1 // pred_check
      _
    $region31: #{tpu_custom_call.1} parent=1 // pred_check_branch
      %31 = sbr.rel (0) target = $region33
    $region32: #{tpu_custom_call.1} parent=1 // pred_region
      _
    $region33: #{tpu_custom_call.1} parent=1 // pred_fallthru
      _
    // Predicated region
    $region34: #{tpu_custom_call.1} parent=1 // pred_check
      _
    $region35: #{tpu_custom_call.1} parent=1 // pred_check_branch
      %33 = sbr.rel (0) target = $region37
    $region36: #{tpu_custom_call.1} parent=1 // pred_region
      _
    $region37: #{tpu_custom_call.1} parent=1 // pred_fallthru
      _
    %v35 = vld [vmem:[%s0] sm:$0xf]
    %v36 = vld [vmem:[%s0 + $0x4] sm:$0xf]
    %v37 = vld [vmem:[%s1] sm:$0xf]
    %v38 = vld [vmem:[%s2] sm:$0xf]
    %v39 = vld [vmem:[%s2 + $0x4] sm:$0xf]
    %v40 = vld [vmem:[%s2 + $0x8] sm:$0xf]
    %v41 = vld [vmem:[%s2 + $0xc] sm:$0xf]
    %v42 = vld [vmem:[%s2 + $0x10] sm:$0xf]
    %v43 = vld [vmem:[%s2 + $0x14] sm:$0xf]
    %v44 = vld [vmem:[%s2 + $0x18] sm:$0xf]
    %v45 = vld [vmem:[%s2 + $0x1c] sm:$0xf]
    %v46 = vld [vmem:[%s2 + $0x20] sm:$0xf]
    %v47 = vld [vmem:[%s2 + $0x24] sm:$0xf]
    %v48 = vld [vmem:[%s2 + $0x28] sm:$0xf]
    %v49 = vld [vmem:[%s2 + $0x2c] sm:$0xf]
    %v50 = vld [vmem:[%s2 + $0x30] sm:$0xf]
    %v51 = vld [vmem:[%s2 + $0x34] sm:$0xf]
    %v52 = vld [vmem:[%s2 + $0x38] sm:$0xf]
    %v53 = vld [vmem:[%s2 + $0x3c] sm:$0xf]
    %v54 = vld [vmem:[%s3] sm:$0xff]
    %v55 = vld [vmem:[%s3 + $0x8] sm:$0xff]
    %v56 = vld [vmem:[%s3 + $0x10] sm:$0xff]
    %v57 = vld [vmem:[%s3 + $0x18] sm:$0xff]
    %v58 = vld [vmem:[%s3 + $0x20] sm:$0xff]
    %v59 = vld [vmem:[%s3 + $0x28] sm:$0xff]
    %v60 = vld [vmem:[%s3 + $0x30] sm:$0xff]
    %v61 = vld [vmem:[%s3 + $0x38] sm:$0xff]
    %v62 = vld [vmem:[%s3 + $0x40] sm:$0xff]
    %v63 = vld [vmem:[%s3 + $0x48] sm:$0xff]
    %v64 = vld [vmem:[%s3 + $0x50] sm:$0xff]
    %v65 = vld [vmem:[%s3 + $0x58] sm:$0xff]
    %v66 = vld [vmem:[%s3 + $0x60] sm:$0xff]
    %v67 = vld [vmem:[%s3 + $0x68] sm:$0xff]
    %v68 = vld [vmem:[%s3 + $0x70] sm:$0xff]
    %v69 = vld [vmem:[%s3 + $0x78] sm:$0xff]
    %71 = vset.pattern.permute.xlu0 0
    %72 = vperm.xlu0 %71, %v54
    %v73 = vpop.permute.xlu0 %72
    %76 = vset.pattern.permute.xlu0 0
    %77 = vperm.xlu0 %76, %v55
    %v78 = vpop.permute.xlu0 %77
    %81 = vset.pattern.permute.xlu0 0
    %82 = vperm.xlu0 %81, %v56
    %v83 = vpop.permute.xlu0 %82
    %86 = vset.pattern.permute.xlu0 0
    %87 = vperm.xlu0 %86, %v57
    %v88 = vpop.permute.xlu0 %87
    %91 = vset.pattern.permute.xlu0 0
    %92 = vperm.xlu0 %91, %v58
    %v93 = vpop.permute.xlu0 %92
    %96 = vset.pattern.permute.xlu0 0
    %97 = vperm.xlu0 %96, %v59
    %v98 = vpop.permute.xlu0 %97
    %101 = vset.pattern.permute.xlu0 0
    %102 = vperm.xlu0 %101, %v60
    %v103 = vpop.permute.xlu0 %102
    %106 = vset.pattern.permute.xlu0 0
    %107 = vperm.xlu0 %106, %v61
    %v108 = vpop.permute.xlu0 %107
    %111 = vset.pattern.permute.xlu0 0
    %112 = vperm.xlu0 %111, %v62
    %v113 = vpop.permute.xlu0 %112
    %116 = vset.pattern.permute.xlu0 0
    %117 = vperm.xlu0 %116, %v63
    %v118 = vpop.permute.xlu0 %117
    %121 = vset.pattern.permute.xlu0 0
    %122 = vperm.xlu0 %121, %v64
    %v123 = vpop.permute.xlu0 %122
    %126 = vset.pattern.permute.xlu0 0
    %127 = vperm.xlu0 %126, %v65
    %v128 = vpop.permute.xlu0 %127
    %131 = vset.pattern.permute.xlu0 0
    %132 = vperm.xlu0 %131, %v66
    %v133 = vpop.permute.xlu0 %132
    %136 = vset.pattern.permute.xlu0 0
    %137 = vperm.xlu0 %136, %v67
    %v138 = vpop.permute.xlu0 %137
    %141 = vset.pattern.permute.xlu0 0
    %142 = vperm.xlu0 %141, %v68
    %v143 = vpop.permute.xlu0 %142
    %146 = vset.pattern.permute.xlu0 0
    %147 = vperm.xlu0 %146, %v69
    %v148 = vpop.permute.xlu0 %147
    %v166 = vunpack.c.l.b16 %v38
    %v167 = vunpack.c.l.b16 %v39
    %v168 = vunpack.c.l.b16 %v40
    %v169 = vunpack.c.l.b16 %v41
    %v170 = vunpack.c.l.b16 %v42
    %v171 = vunpack.c.l.b16 %v43
    %v172 = vunpack.c.l.b16 %v44
    %v173 = vunpack.c.l.b16 %v45
    %v174 = vunpack.c.l.b16 %v46
    %v175 = vunpack.c.l.b16 %v47
    %v176 = vunpack.c.l.b16 %v48
    %v177 = vunpack.c.l.b16 %v49
    %v178 = vunpack.c.l.b16 %v50
    %v179 = vunpack.c.l.b16 %v51
    %v180 = vunpack.c.l.b16 %v52
    %v181 = vunpack.c.l.b16 %v53
    %v182 = vpack.c.b16 %v167, %v166
    %v183 = vpack.c.b16 %v169, %v168
    %v184 = vpack.c.b16 %v171, %v170
    %v185 = vpack.c.b16 %v173, %v172
    %v186 = vpack.c.b16 %v175, %v174
    %v187 = vpack.c.b16 %v177, %v176
    %v188 = vpack.c.b16 %v179, %v178
    %v189 = vpack.c.b16 %v181, %v180
    %v192 = vunpack.c.l.b16 %v35
    %v193 = vunpack.c.l.b16 %v36
    %v194 = vpack.c.b16 %v193, %v192
    %vm196 = vcmask 130048
    %v198 = vsel %vm196, %v182, 0
    %v201 = vsel %vm196, %v183, 0
    %v204 = vsel %vm196, %v184, 0
    %v207 = vsel %vm196, %v185, 0
    %v210 = vsel %vm196, %v186, 0
    %v213 = vsel %vm196, %v187, 0
    %v216 = vsel %vm196, %v188, 0
    %v219 = vsel %vm196, %v189, 0
    %221 = vmatpush.bf16.msra.mxu0 0
    %222 = vmatpush.bf16.msra.mxu0 0
    %223 = vmatpush.bf16.msra.mxu0 0
    %224 = vmatpush.bf16.msra.mxu0 0
    %225 = vmatpush.bf16.msra.mxu0 0
    %226 = vmatpush.bf16.msra.mxu0 0
    %227 = vmatpush.bf16.msra.mxu0 0
    %228 = vmatpush.bf16.msra.mxu0 %v194
    %229 = vmatmul.bf16.gmra.mxu0 %v198
    %v230 = vpop.f32.mrf.mxu0
    %v231 = vadd.f32 %v73, %v230
    %v232 = vpop.f32.mrf.mxu0
    %v233 = vadd.f32 %v78, %v232
    %234 = vmatmul.bf16.gmra.mxu0 %v201
    %v235 = vpop.f32.mrf.mxu0
    %v236 = vadd.f32 %v83, %v235
    %v237 = vpop.f32.mrf.mxu0
    %v238 = vadd.f32 %v88, %v237
    %239 = vmatmul.bf16.gmra.mxu0 %v204
    %v240 = vpop.f32.mrf.mxu0
    %v241 = vadd.f32 %v93, %v240
    %v242 = vpop.f32.mrf.mxu0
    %v243 = vadd.f32 %v98, %v242
    %244 = vmatmul.bf16.gmra.mxu0 %v207
    %v245 = vpop.f32.mrf.mxu0
    %v246 = vadd.f32 %v103, %v245
    %v247 = vpop.f32.mrf.mxu0
    %v248 = vadd.f32 %v108, %v247
    %249 = vmatmul.bf16.gmra.mxu0 %v210
    %v250 = vpop.f32.mrf.mxu0
    %v251 = vadd.f32 %v113, %v250
    %v252 = vpop.f32.mrf.mxu0
    %v253 = vadd.f32 %v118, %v252
    %254 = vmatmul.bf16.gmra.mxu0 %v213
    %v255 = vpop.f32.mrf.mxu0
    %v256 = vadd.f32 %v123, %v255
    %v257 = vpop.f32.mrf.mxu0
    %v258 = vadd.f32 %v128, %v257
    %259 = vmatmul.bf16.gmra.mxu0 %v216
    %v260 = vpop.f32.mrf.mxu0
    %v261 = vadd.f32 %v133, %v260
    %v262 = vpop.f32.mrf.mxu0
    %v263 = vadd.f32 %v138, %v262
    %264 = vmatmul.bf16.gmra.mxu0 %v219
    %v265 = vpop.f32.mrf.mxu0
    %v266 = vadd.f32 %v143, %v265
    %v267 = vpop.f32.mrf.mxu0
    %v268 = vadd.f32 %v148, %v267
    %269 = vdwg.mxu0
    %v270 = vmax.f32 %v231, 0.0
    %v271 = vmax.f32 %v233, 0.0
    %v272 = vmax.f32 %v236, 0.0
    %v273 = vmax.f32 %v238, 0.0
    %v274 = vmax.f32 %v241, 0.0
    %v275 = vmax.f32 %v243, 0.0
    %v276 = vmax.f32 %v246, 0.0
    %v277 = vmax.f32 %v248, 0.0
    %v278 = vld [vmem:[%s4] sm:$0xf]
    %v279 = vpack.c.bf16 %v271, %v270
    %v280 = vpack.c.bf16 %v273, %v272
    %v281 = vpack.c.bf16 %v275, %v274
    %v282 = vpack.c.bf16 %v277, %v276
    %v283 = vld [vmem:[%s5] sm:$0xff]
    %285 = vset.pattern.permute.xlu0 0
    %286 = vperm.xlu0 %285, %v283
    %v287 = vpop.permute.xlu0 %286
    %vm289 = vcmask 523264
    %v291 = vsel %vm289, %v278, 0
    %293 = vmatpush.bf16.msra.mxu0 0
    %294 = vmatpush.bf16.msra.mxu0 0
    %295 = vmatpush.bf16.msra.mxu0 0
    %296 = vmatpush.bf16.msra.mxu0 0
    %297 = vmatpush.bf16.msra.mxu0 %v282
    %298 = vmatpush.bf16.msra.mxu0 %v281
    %299 = vmatpush.bf16.msra.mxu0 %v280
    %300 = vmatpush.bf16.msra.mxu0 %v279
    %301 = vmatmul.bf16.gmra.mxu0 %v291
    %v302 = vpop.f32.mrf.mxu0
    %v303 = vadd.f32 %v287, %v302
    %v304 = vpop.f32.mrf.mxu0
    %305 = vdwg.mxu0
    %v306 = vmax.f32 %v303, -5.0
    %v307 = vmin.f32 %v306, 0.5
    %v308 = vmul.f32 %v307, 1.442695
    %v309 = vpow.pop %v308
    %v311 = vrot.slane %v37, 4
    %v313 = vmul.f32 %v309, %v311
    %v315 = vrot.slane %v313, 4
    %v317 = vadd.f32 %v303, %v315
    %v318 = vmul.f32 %v37, -0.5
    %v319 = vmul.f32 %v318, %v37
    %v321 = vrot.slane %v307, 4
    %v323 = vsub.f32 %v319, %v321
    %v324 = vsub.f32 %v323, 0.9189385
    %vm325 = vcmask 1043456
    %v326 = vsel %vm325, %v324, 0.0
    %v327 = vrot.slane %v326, 4
    %v328 = vadd.f32 %v326, %v327
    %v329 = vrot.slane %v328, 2
    %v330 = vadd.f32 %v328, %v329
    %v331 = vrot.slane %v330, 1
    %v332 = vadd.f32 %v330, %v331
    %v333 = vld [vmem:[%s6] sm:$0xf]
    %v334 = vld [vmem:[%s6 + $0x4] sm:$0xf]
    %v335 = vld [vmem:[%s6 + $0x8] sm:$0xf]
    %v336 = vld [vmem:[%s6 + $0xc] sm:$0xf]
    %v337 = vld [vmem:[%s6 + $0x10] sm:$0xf]
    %v338 = vld [vmem:[%s6 + $0x14] sm:$0xf]
    %v339 = vld [vmem:[%s6 + $0x18] sm:$0xf]
    %v340 = vld [vmem:[%s6 + $0x1c] sm:$0xf]
    %v341 = vpack.c.bf16 %v317, %v317
    %v350 = vunpack.c.l.b16 %v333
    %v351 = vunpack.c.l.b16 %v334
    %v352 = vunpack.c.l.b16 %v335
    %v353 = vunpack.c.l.b16 %v336
    %v354 = vunpack.c.l.b16 %v337
    %v355 = vunpack.c.l.b16 %v338
    %v356 = vunpack.c.l.b16 %v339
    %v357 = vunpack.c.l.b16 %v340
    %v358 = vpack.c.b16 %v351, %v350
    %v359 = vpack.c.b16 %v353, %v352
    %v360 = vpack.c.b16 %v355, %v354
    %v361 = vpack.c.b16 %v357, %v356
    %vm362 = vcmask 31744
    %v364 = vsel %vm362, %v358, 0
    %v367 = vsel %vm362, %v359, 0
    %v370 = vsel %vm362, %v360, 0
    %v373 = vsel %vm362, %v361, 0
    %vm375 = vcmask 1041408
    %v377 = vsel %vm375, %v341, 0
    %379 = vmatpush.bf16.msra.mxu0 0
    %380 = vmatpush.bf16.msra.mxu0 0
    %381 = vmatpush.bf16.msra.mxu0 0
    %382 = vmatpush.bf16.msra.mxu0 0
    %383 = vmatpush.bf16.msra.mxu0 0
    %384 = vmatpush.bf16.msra.mxu0 0
    %385 = vmatpush.bf16.msra.mxu0 0
    %386 = vmatpush.bf16.msra.mxu0 %v377
    %387 = vmatmul.bf16.gmra.mxu0 %v364
    %v388 = vpop.f32.mrf.mxu0
    %v389 = vadd.f32 0.0, %v388
    %v390 = vpop.f32.mrf.mxu0
    %v391 = vadd.f32 0.0, %v390
    %392 = vmatmul.bf16.gmra.mxu0 %v367
    %v393 = vpop.f32.mrf.mxu0
    %v394 = vadd.f32 0.0, %v393
    %v395 = vpop.f32.mrf.mxu0
    %v396 = vadd.f32 0.0, %v395
    %397 = vmatmul.bf16.gmra.mxu0 %v370
    %v398 = vpop.f32.mrf.mxu0
    %v399 = vadd.f32 0.0, %v398
    %v400 = vpop.f32.mrf.mxu0
    %v401 = vadd.f32 0.0, %v400
    %402 = vmatmul.bf16.gmra.mxu0 %v373
    %v403 = vpop.f32.mrf.mxu0
    %v404 = vadd.f32 0.0, %v403
    %v405 = vpop.f32.mrf.mxu0
    %v406 = vadd.f32 0.0, %v405
    %407 = vdwg.mxu0
    %v408 = vadd.f32 %v251, %v389
    %v409 = vadd.f32 %v253, %v391
    %v410 = vadd.f32 %v256, %v394
    %v411 = vadd.f32 %v258, %v396
    %v412 = vadd.f32 %v261, %v399
    %v413 = vadd.f32 %v263, %v401
    %v414 = vadd.f32 %v266, %v404
    %v415 = vadd.f32 %v268, %v406
    %v416 = vmax.f32 %v408, 0.0
    %v417 = vmax.f32 %v409, 0.0
    %v418 = vmax.f32 %v410, 0.0
    %v419 = vmax.f32 %v411, 0.0
    %v420 = vmax.f32 %v412, 0.0
    %v421 = vmax.f32 %v413, 0.0
    %v422 = vmax.f32 %v414, 0.0
    %v423 = vmax.f32 %v415, 0.0
    %v424 = vld [vmem:[%s7] sm:$0x1]
    %v425 = vpack.c.bf16 %v417, %v416
    %v426 = vpack.c.bf16 %v419, %v418
    %v427 = vpack.c.bf16 %v421, %v420
    %v428 = vpack.c.bf16 %v423, %v422
    %s429 = sld [smem:[#allocation2]]
    %v430 = vstv %s429
    %v432 = vsel %vm289, %v424, 0
    %434 = vmatpush.bf16.msra.mxu0 0
    %435 = vmatpush.bf16.msra.mxu0 0
    %436 = vmatpush.bf16.msra.mxu0 0
    %437 = vmatpush.bf16.msra.mxu0 0
    %438 = vmatpush.bf16.msra.mxu0 %v428
    %439 = vmatpush.bf16.msra.mxu0 %v427
    %440 = vmatpush.bf16.msra.mxu0 %v426
    %441 = vmatpush.bf16.msra.mxu0 %v425
    %442 = vmatmul.bf16.gmra.mxu0 %v432
    %v443 = vpop.f32.mrf.mxu0
    %v444 = vadd.f32 %v430, %v443
    %v445 = vpop.f32.mrf.mxu0
    %446 = vdwg.mxu0
    %447 = vst [vmem:[#allocation3] sm:$0xf] %v317
    %448 = vst [vmem:[#allocation3 + $0x4] sm:$0x1] %v332
    %449 = vst [vmem:[#allocation3 + $0x5] sm:$0x1] %v444
    // Predicated region
    $region38: #{tpu_custom_call.1} parent=1 // pred_check
      _
    $region39: #{tpu_custom_call.1} parent=1 // pred_check_branch
      %451 = sbr.rel (0) target = $region41
    $region40: #{tpu_custom_call.1} parent=1 // pred_region
      %453 = vsyncadd [#allocation4], 0
      %s455 = sshll.u32 [#allocation3], 4
      %s456 = int_to_ptr.vmem [resolvable:$true] %s455
      %s457 = sshll.u32 %s9, 4
      %s458 = int_to_ptr.hbm [resolvable:$true] %s457
      %460 = dma.vmem_to_hbm [thread:$0]  %s456, 128, %s458, [#allocation4]
    $region41: #{tpu_custom_call.1} parent=1 // pred_fallthru
      _
    // Predicated region
    $region42: #{tpu_custom_call.1} parent=1 // pred_check
      _
    $region43: #{tpu_custom_call.1} parent=1 // pred_check_branch
      %462 = sbr.rel (0) target = $region45
    $region44: #{tpu_custom_call.1} parent=1 // pred_region
      %464 = dma.done [#allocation4], 128
    $region45: #{tpu_custom_call.1} parent=1 // pred_fallthru
      _
    %465 = vsyncpa [#allocation4], 1

</llo_original>
